<compile_context>
chip_gen: v6e
topology: v6e:2x2x1
jax: 0.10.0
libtpu: 0.0.40
codegen_flags: <defaults>
</compile_context>

<pallas_src>
import functools

import jax
import jax.numpy as jnp
from jax import lax
from jax.experimental import pallas as pl
from jax.experimental.pallas import tpu as pltpu

_LANE = 128
_SUBLANE = 8

# ---- fused sin/cos: shared Cody-Waite range reduction + Cephes f32 polynomials ----
_TWO_OVER_PI = 0.6366197723675814
_PIO2_1 = 1.5703125                    # pi/2 split into (near-)exact f32 chunks
_PIO2_2 = 4.837512969970703125e-4
_PIO2_3 = 7.549789954891882e-8


def _range_reduce(phase):
    """phase = q*(pi/2) + r with |r| <= pi/4; q returned as float."""
    q = jnp.floor(phase * _TWO_OVER_PI + 0.5)
    r = phase - q * _PIO2_1
    r = r - q * _PIO2_2
    r = r - q * _PIO2_3
    return q, r


def _sin_cos_polys(r):
    z = r * r
    sin_p = r + r * z * (-1.6666654611e-1
                         + z * (8.3321608736e-3 + z * (-1.9515295891e-4)))
    cos_p = 1.0 - 0.5 * z + z * z * (
        4.166664568298827e-2
        + z * (-1.388731625493765e-3 + z * 2.443315711809948e-5))
    return sin_p, cos_p


# ------------------------- kernels -------------------------
def _bochner_packed_kernel(x_ref, expand_ref, freq_ref, quad_ref, c_ref, o_ref):
    # x_ref:      (tile, k)  k timestamps per packed output row
    # expand_ref: (k, W)     0/1 lane-expansion matrix (resident across steps)
    # freq_ref:   (1, W)     per-lane frequency pattern (resident)
    # quad_ref:   (1, W)     per-lane quadrant offset: 0.0 -> sin lane, 1.0 -> cos lane
    # c_ref:      (1, W)     per-lane output scale (resident)
    # o_ref:      (tile, W)  lane-dense output tile, W = k * H = 128
    x_e = jnp.dot(x_ref[...], expand_ref[...],
                  precision=lax.Precision.HIGHEST,
                  preferred_element_type=jnp.float32)          # MXU lane expansion
    phase = x_e * freq_ref[...]
    q, r = _range_reduce(phase)
    n = (q + quad_ref[...]).astype(jnp.int32)                  # cos(x) == sin(x + pi/2)
    sin_p, cos_p = _sin_cos_polys(r)
    val = jnp.where((n & 1) == 1, cos_p, sin_p)
    val = jnp.where((n & 2) == 2, -val, val)
    o_ref[...] = (val * c_ref[...]).astype(o_ref.dtype)


def _bochner_kernel(x_ref, freq_ref, c_sin_ref, c_cos_ref, o_ref, *, d):
    # x_ref: (tile, 1); freq_ref/c_*_ref: (1, d); o_ref: (tile, 2*d)
    phase = x_ref[...] * freq_ref[...]                          # (tile, d) lane-broadcast
    q, r = _range_reduce(phase)
    n = q.astype(jnp.int32)
    sin_p, cos_p = _sin_cos_polys(r)
    swap = (n & 1) == 1
    sin_v = jnp.where(swap, cos_p, sin_p)
    sin_v = jnp.where((n & 2) == 2, -sin_v, sin_v)
    cos_v = jnp.where(swap, sin_p, cos_p)
    cos_v = jnp.where(((n + 1) & 2) == 2, -cos_v, cos_v)
    # Two direct half stores (no lane-axis concatenate temporary).
    o_ref[:, :d] = (sin_v * c_sin_ref[...]).astype(o_ref.dtype)
    o_ref[:, d:] = (cos_v * c_cos_ref[...]).astype(o_ref.dtype)


# ------------------------- wrapper -------------------------
def _round_up(a, b):
    return (a + b - 1) // b * b


def _pick_tile(n_rows, out_lanes, in_lanes, out_itemsize,
               budget_bytes=8 * 1024 * 1024):
    # Double-buffered, lane-padded VMEM footprint of the streaming blocks.
    row_bytes = (_round_up(out_lanes, _LANE) * out_itemsize
                 + _round_up(in_lanes, _LANE) * 4)
    tile = max(_SUBLANE, budget_bytes // (2 * row_bytes))
    tile = (tile // _SUBLANE) * _SUBLANE
    # v7x megacore: keep >= 2 grid steps when there is enough work.
    tile = min(tile, max(_SUBLANE, _round_up(pl.cdiv(n_rows, 2), _SUBLANE)))
    if n_rows <= _SUBLANE:
        tile = n_rows          # single block == full (tiny) array
    return tile


def bochner_embedding(timestamps, w, c, *, out_dtype=jnp.float32):
    """timestamps: (B, T); w: (d,); c: (H,), H == 2*d.  Returns (B, T, H)."""
    B, T = timestamps.shape
    d = w.shape[0]
    H = c.shape[0]
    assert H == 2 * d, "hidden_units must be 2 * d"
    rows = B * T

    freq = 1.0 / (10.0 ** w.astype(jnp.float32))                 # (d,)
    c32 = c.astype(jnp.float32)
    # NOTE: out_dtype=jnp.bfloat16 halves HBM write traffic (biggest win on v5e).
    compiler_params = pltpu.CompilerParams(
        dimension_semantics=("parallel",),
        vmem_limit_bytes=32 * 1024 * 1024)

    # ---- H < 128: lane-pack k timestamps per output row (lane-dense stores). ----
    pack = (H < _LANE) and (_LANE % H == 0) and (rows % (_LANE // H) == 0)
    if pack:
        k = _LANE // H
        W = k * H                                                 # == 128
        rows_p = rows // k
        x = timestamps.astype(jnp.float32).reshape(rows_p, k)
        expand = jnp.repeat(jnp.eye(k, dtype=jnp.float32), H, axis=1)       # (k, W)
        freq_pat = jnp.tile(jnp.concatenate([freq, freq]), k).reshape(1, W)
        quad_pat = jnp.tile(
            jnp.concatenate([jnp.zeros((d,), jnp.float32),
                             jnp.ones((d,), jnp.float32)]), k).reshape(1, W)
        c_pat = jnp.tile(c32, k).reshape(1, W)

        tile = _pick_tile(rows_p, W, k, jnp.dtype(out_dtype).itemsize)
        out = pl.pallas_call(
            _bochner_packed_kernel,
            out_shape=jax.ShapeDtypeStruct((rows_p, W), out_dtype),
            grid=(pl.cdiv(rows_p, tile),),
            in_specs=[
                pl.BlockSpec((tile, k), lambda i: (i, 0)),        # packed timestamps
                pl.BlockSpec((k, W), lambda i: (0, 0)),           # expansion matrix
                pl.BlockSpec((1, W), lambda i: (0, 0)),           # freq pattern
                pl.BlockSpec((1, W), lambda i: (0, 0)),           # quadrant offsets
                pl.BlockSpec((1, W), lambda i: (0, 0)),           # scales
            ],
            out_specs=pl.BlockSpec((tile, W), lambda i: (i, 0)),
            compiler_params=compiler_params,
        )(x, expand, freq_pat, quad_pat, c_pat)
        return out.reshape(B, T, H)                               # pure view

    # ---- H >= 128 (or not packable): (rows, H) slab, two half stores. ----
    # TODO(synk): when H < 128 and rows % (128//H) != 0 we fall back to this
    # lane-sparse path instead of padding the packed layout.
    x = timestamps.astype(jnp.float32).reshape(rows, 1)
    freq2 = freq.reshape(1, d)
    c_sin = c32[:d].reshape(1, d)
    c_cos = c32[d:].reshape(1, d)

    tile = _pick_tile(rows, H, 1, jnp.dtype(out_dtype).itemsize)
    out = pl.pallas_call(
        functools.partial(_bochner_kernel, d=d),
        out_shape=jax.ShapeDtypeStruct((rows, H), out_dtype),
        grid=(pl.cdiv(rows, tile),),
        in_specs=[
            pl.BlockSpec((tile, 1), lambda i: (i, 0)),            # timestamps
            pl.BlockSpec((1, d), lambda i: (0, 0)),               # freq (resident)
            pl.BlockSpec((1, d), lambda i: (0, 0)),               # c_sin (resident)
            pl.BlockSpec((1, d), lambda i: (0, 0)),               # c_cos (resident)
        ],
        out_specs=pl.BlockSpec((tile, H), lambda i: (i, 0)),
        compiler_params=compiler_params,
    )(x, freq2, c_sin, c_cos)
    return out.reshape(B, T, H)                                   # pure view


if __name__ == "__main__":
    key = jax.random.PRNGKey(0)
    k1, k2 = jax.random.split(key)

    def reference(ts, w, c):
        freq = 1.0 / (10.0 ** w)
        phase = ts[..., None] * freq
        return jnp.concatenate([jnp.sin(phase), jnp.cos(phase)], axis=-1) * c

    # Config matching the module: batch=2, max_len=8, hidden=32 (H < 128 -> packed path).
    B, T, hidden = 2, 8, 32
    d = hidden // 2
    w = jnp.linspace(0.0, 8.0, d).astype(jnp.float32)             # init_freq_base
    c = jnp.ones((hidden,), dtype=jnp.float32)
    ts = jax.random.uniform(k1, (B, T), jnp.float32, 0.0, 100.0)
    out = jax.block_until_ready(bochner_embedding(ts, w, c))
    ref = reference(ts, w, c)
    assert out.shape == (B, T, hidden), out.shape
    assert jnp.allclose(out, ref, rtol=1e-4, atol=1e-4), float(
        jnp.max(jnp.abs(out - ref)))

    # Second tiny config with hidden >= 128 exercises the two-half-store path.
    B2, T2, hidden2 = 2, 8, 256
    d2 = hidden2 // 2
    w2 = jnp.linspace(0.0, 8.0, d2).astype(jnp.float32)
    c2 = jnp.ones((hidden2,), dtype=jnp.float32)
    ts2 = jax.random.uniform(k2, (B2, T2), jnp.float32, 0.0, 100.0)
    out2 = jax.block_until_ready(bochner_embedding(ts2, w2, c2))
    ref2 = reference(ts2, w2, c2)
    assert out2.shape == (B2, T2, hidden2), out2.shape
    assert jnp.allclose(out2, ref2, rtol=1e-4, atol=1e-4), float(
        jnp.max(jnp.abs(out2 - ref2)))

    print("KERNEL_OK")
</pallas_src>

<mosaic_0001>
module attributes {stable_mosaic.version = 11 : i64} {
  func.func @_bochner_packed_kernel(%arg0: i32, %arg1: memref<4x4xf32, #tpu.memory_space<vmem>>, %arg2: memref<4x128xf32, #tpu.memory_space<vmem>>, %arg3: memref<1x128xf32, #tpu.memory_space<vmem>>, %arg4: memref<1x128xf32, #tpu.memory_space<vmem>>, %arg5: memref<1x128xf32, #tpu.memory_space<vmem>>, %arg6: memref<4x128xf32, #tpu.memory_space<vmem>>) attributes {dimension_semantics = [#tpu.dimension_semantics<parallel>], iteration_bounds = array<i64: 1>, scalar_prefetch = 0 : i64, scratch_operands = 0 : i64, tpu.core_type = #tpu.core_type<tc>, window_params = [{transform_indices = @transform_0, window_bounds = array<i64: 4, 4>}, {pipeline_mode = #tpu.pipeline_mode<synchronous>, transform_indices = @transform_1, window_bounds = array<i64: 4, 128>}, {pipeline_mode = #tpu.pipeline_mode<synchronous>, transform_indices = @transform_2, window_bounds = array<i64: 1, 128>}, {pipeline_mode = #tpu.pipeline_mode<synchronous>, transform_indices = @transform_3, window_bounds = array<i64: 1, 128>}, {pipeline_mode = #tpu.pipeline_mode<synchronous>, transform_indices = @transform_4, window_bounds = array<i64: 1, 128>}, {transform_indices = @transform_5, window_bounds = array<i64: 4, 128>}]} {
    %c0 = arith.constant 0 : index
    %c0_0 = arith.constant 0 : index
    %0 = vector.load %arg1[%c0, %c0_0] : memref<4x4xf32, #tpu.memory_space<vmem>>, vector<4x4xf32>
    %c0_1 = arith.constant 0 : index
    %c0_2 = arith.constant 0 : index
    %1 = vector.load %arg2[%c0_1, %c0_2] : memref<4x128xf32, #tpu.memory_space<vmem>>, vector<4x128xf32>
    %cst = arith.constant dense<0.000000e+00> : vector<4x128xf32>
    %2 = tpu.matmul %0, %1, %cst {dimension_numbers = #tpu.dot_dimension_numbers<[1], [0], [0], [1], [0, 0, 1, 1], [], []>, precision = #tpu.contract_precision<fp32>} : vector<4x4xf32>, vector<4x128xf32>, vector<4x128xf32> -> vector<4x128xf32>
    %c0_3 = arith.constant 0 : index
    %c0_4 = arith.constant 0 : index
    %3 = vector.load %arg3[%c0_3, %c0_4] : memref<1x128xf32, #tpu.memory_space<vmem>>, vector<1x128xf32>
    %4 = vector.broadcast %3 : vector<1x128xf32> to vector<4x128xf32>
    %5 = arith.mulf %2, %4 : vector<4x128xf32>
    %cst_5 = arith.constant 0.636619746 : f32
    %6 = vector.broadcast %cst_5 : f32 to vector<4x128xf32>
    %7 = arith.mulf %5, %6 : vector<4x128xf32>
    %cst_6 = arith.constant 5.000000e-01 : f32
    %8 = vector.broadcast %cst_6 : f32 to vector<4x128xf32>
    %9 = arith.addf %7, %8 : vector<4x128xf32>
    %10 = math.floor %9 : vector<4x128xf32>
    %cst_7 = arith.constant 1.5703125 : f32
    %11 = vector.broadcast %cst_7 : f32 to vector<4x128xf32>
    %12 = arith.mulf %10, %11 : vector<4x128xf32>
    %13 = arith.subf %5, %12 : vector<4x128xf32>
    %cst_8 = arith.constant 4.83751297E-4 : f32
    %14 = vector.broadcast %cst_8 : f32 to vector<4x128xf32>
    %15 = arith.mulf %10, %14 : vector<4x128xf32>
    %16 = arith.subf %13, %15 : vector<4x128xf32>
    %cst_9 = arith.constant 7.549790e-08 : f32
    %17 = vector.broadcast %cst_9 : f32 to vector<4x128xf32>
    %18 = arith.mulf %10, %17 : vector<4x128xf32>
    %19 = arith.subf %16, %18 : vector<4x128xf32>
    %c0_10 = arith.constant 0 : index
    %c0_11 = arith.constant 0 : index
    %20 = vector.load %arg4[%c0_10, %c0_11] : memref<1x128xf32, #tpu.memory_space<vmem>>, vector<1x128xf32>
    %21 = vector.broadcast %20 : vector<1x128xf32> to vector<4x128xf32>
    %22 = arith.addf %10, %21 : vector<4x128xf32>
    %23 = arith.fptosi %22 : vector<4x128xf32> to vector<4x128xi32>
    %24 = arith.mulf %19, %19 : vector<4x128xf32>
    %25 = arith.mulf %19, %24 : vector<4x128xf32>
    %cst_12 = arith.constant -1.95152956E-4 : f32
    %26 = vector.broadcast %cst_12 : f32 to vector<4x128xf32>
    %27 = arith.mulf %24, %26 : vector<4x128xf32>
    %cst_13 = arith.constant 0.00833216123 : f32
    %28 = vector.broadcast %cst_13 : f32 to vector<4x128xf32>
    %29 = arith.addf %28, %27 : vector<4x128xf32>
    %30 = arith.mulf %24, %29 : vector<4x128xf32>
    %cst_14 = arith.constant -0.166666552 : f32
    %31 = vector.broadcast %cst_14 : f32 to vector<4x128xf32>
    %32 = arith.addf %31, %30 : vector<4x128xf32>
    %33 = arith.mulf %25, %32 : vector<4x128xf32>
    %34 = arith.addf %19, %33 : vector<4x128xf32>
    %cst_15 = arith.constant 5.000000e-01 : f32
    %35 = vector.broadcast %cst_15 : f32 to vector<4x128xf32>
    %36 = arith.mulf %35, %24 : vector<4x128xf32>
    %cst_16 = arith.constant 1.000000e+00 : f32
    %37 = vector.broadcast %cst_16 : f32 to vector<4x128xf32>
    %38 = arith.subf %37, %36 : vector<4x128xf32>
    %39 = arith.mulf %24, %24 : vector<4x128xf32>
    %cst_17 = arith.constant 2.44331568E-5 : f32
    %40 = vector.broadcast %cst_17 : f32 to vector<4x128xf32>
    %41 = arith.mulf %24, %40 : vector<4x128xf32>
    %cst_18 = arith.constant -0.00138873165 : f32
    %42 = vector.broadcast %cst_18 : f32 to vector<4x128xf32>
    %43 = arith.addf %42, %41 : vector<4x128xf32>
    %44 = arith.mulf %24, %43 : vector<4x128xf32>
    %cst_19 = arith.constant 0.0416666456 : f32
    %45 = vector.broadcast %cst_19 : f32 to vector<4x128xf32>
    %46 = arith.addf %45, %44 : vector<4x128xf32>
    %47 = arith.mulf %39, %46 : vector<4x128xf32>
    %48 = arith.addf %38, %47 : vector<4x128xf32>
    %c1_i32 = arith.constant 1 : i32
    %49 = vector.broadcast %c1_i32 : i32 to vector<4x128xi32>
    %50 = arith.andi %23, %49 : vector<4x128xi32>
    %c1_i32_20 = arith.constant 1 : i32
    %51 = vector.broadcast %c1_i32_20 : i32 to vector<4x128xi32>
    %52 = arith.cmpi eq, %50, %51 : vector<4x128xi32>
    %53 = arith.select %52, %48, %34 : vector<4x128xi1>, vector<4x128xf32>
    %c2_i32 = arith.constant 2 : i32
    %54 = vector.broadcast %c2_i32 : i32 to vector<4x128xi32>
    %55 = arith.andi %23, %54 : vector<4x128xi32>
    %c2_i32_21 = arith.constant 2 : i32
    %56 = vector.broadcast %c2_i32_21 : i32 to vector<4x128xi32>
    %57 = arith.cmpi eq, %55, %56 : vector<4x128xi32>
    %cst_22 = arith.constant 0.000000e+00 : f32
    %58 = vector.broadcast %cst_22 : f32 to vector<4x128xf32>
    %59 = arith.subf %58, %53 : vector<4x128xf32>
    %60 = arith.select %57, %59, %53 : vector<4x128xi1>, vector<4x128xf32>
    %c0_23 = arith.constant 0 : index
    %c0_24 = arith.constant 0 : index
    %61 = vector.load %arg5[%c0_23, %c0_24] : memref<1x128xf32, #tpu.memory_space<vmem>>, vector<1x128xf32>
    %62 = vector.broadcast %61 : vector<1x128xf32> to vector<4x128xf32>
    %63 = arith.mulf %60, %62 : vector<4x128xf32>
    %c0_25 = arith.constant 0 : index
    %c0_26 = arith.constant 0 : index
    %64 = vector.load %arg6[%c0_25, %c0_26] : memref<4x128xf32, #tpu.memory_space<vmem>>, vector<4x128xf32>
    tpu.vector_store %arg6[%c0_25, %c0_26], %63 {strides = array<i32>} : memref<4x128xf32, #tpu.memory_space<vmem>>, vector<4x128xf32>,
    return
  }
  func.func @transform_0(%arg0: i32) -> (i32, i32) {
    %c0_i32 = arith.constant 0 : i32
    %c0_i32_0 = arith.constant 0 : i32
    return %arg0, %c0_i32 : i32, i32
  }
  func.func @transform_1(%arg0: i32) -> (i32, i32) {
    %c0_i32 = arith.constant 0 : i32
    %c0_i32_0 = arith.constant 0 : i32
    %c0_i32_1 = arith.constant 0 : i32
    return %c0_i32, %c0_i32_0 : i32, i32
  }
  func.func @transform_2(%arg0: i32) -> (i32, i32) {
    %c0_i32 = arith.constant 0 : i32
    %c0_i32_0 = arith.constant 0 : i32
    %c0_i32_1 = arith.constant 0 : i32
    return %c0_i32, %c0_i32_0 : i32, i32
  }
  func.func @transform_3(%arg0: i32) -> (i32, i32) {
    %c0_i32 = arith.constant 0 : i32
    %c0_i32_0 = arith.constant 0 : i32
    %c0_i32_1 = arith.constant 0 : i32
    return %c0_i32, %c0_i32_0 : i32, i32
  }
  func.func @transform_4(%arg0: i32) -> (i32, i32) {
    %c0_i32 = arith.constant 0 : i32
    %c0_i32_0 = arith.constant 0 : i32
    %c0_i32_1 = arith.constant 0 : i32
    return %c0_i32, %c0_i32_0 : i32, i32
  }
  func.func @transform_5(%arg0: i32) -> (i32, i32) {
    %c0_i32 = arith.constant 0 : i32
    %c0_i32_0 = arith.constant 0 : i32
    return %arg0, %c0_i32 : i32, i32
  }
}

</mosaic_0001>

<llo_original>
// kernel: tpu_custom_call.1
$region0: #{tpu_custom_call.1}
  #allocation0 [shape = 'u32[]', space=smem, size = 0x4, offset = 0x4, fixed_abs, tag = 'smem constant byte address 0x4 - core index']
  #allocation1 [shape = 'u32[144,128]{1,0:T(1,128)}', space=vmem, size = 0x12000, scoped, tag = 'internal scratch']
  %s0 = inlined_call_operand.hbm [shape: f32[4,4], index: 0, kind: input, shape index: {}]
  %s1 = inlined_call_operand.hbm [shape: f32[4,128], index: 1, kind: input, shape index: {}]
  %s2 = inlined_call_operand.vmem [shape: f32[1,128], index: 2, kind: input, shape index: {}]
  %s3 = inlined_call_operand.vmem [shape: f32[1,128], index: 3, kind: input, shape index: {}]
  %s4 = inlined_call_operand.vmem [shape: f32[1,128], index: 4, kind: input, shape index: {}]
  %s5 = inlined_call_operand.hbm [shape: f32[4,128], index: 5, kind: output, shape index: {}]
  %s6 = sld [smem:[#allocation0]]
  $region38: #{tpu_custom_call.1} parent=0
    _
  %s8 = ssub.s32 1, %s6
  %s9 = scalar_select 0, %s8, %s6
  $region1: #{tpu_custom_call.1} parent=0
    #allocation2 [shape = 'u8[2048]{0}', space=vmem, size = 0x800, scoped, tag = 'input window, operand 0, single buffered']
    #allocation3 [shape = 's32[1]{0}', space=sflag, size = 0x4, scoped, tag = 'scoped memory for tpu_custom_call.1']
    #allocation4 [shape = 's32[1]{0}', space=sflag, size = 0x4, scoped, tag = 'scoped memory for tpu_custom_call.1']
    #allocation5 [shape = 'u8[2048]{0}', space=vmem, size = 0x800, scoped, tag = 'input window, operand 1, single buffered']
    #allocation6 [shape = 's32[1]{0}', space=sflag, size = 0x4, scoped, tag = 'scoped memory for tpu_custom_call.1']
    #allocation7 [shape = 'u8[2048]{0}', space=vmem, size = 0x800, scoped, tag = 'output window, operand 0, single buffered']
    %10 = vsyncpa [#allocation3], 0
    %11 = vsyncpa [#allocation6], 0
    %12 = vsyncpa [#allocation4], 0
    // Predicated region
    $region2: #{tpu_custom_call.1} parent=1 // pred_check
      _
    $region3: #{tpu_custom_call.1} parent=1 // pred_check_branch
      %14 = sbr.rel (0) target = $region5
    $region4: #{tpu_custom_call.1} parent=1 // pred_region
      %s16 = ssub.s32 64, 64
      %17 = vsyncadd [#allocation3], %s16
      %s19 = sshll.u32 [#allocation2], 4
      %s20 = int_to_ptr.vmem [resolvable:$true] %s19
      %22 = dma.hbm_to_vmem [thread:$0]  %s0, 64, %s20, [#allocation3]
    $region5: #{tpu_custom_call.1} parent=1 // pred_fallthru
      _
    // Predicated region
    $region6: #{tpu_custom_call.1} parent=1 // pred_check
      _
    $region7: #{tpu_custom_call.1} parent=1 // pred_check_branch
      %24 = sbr.rel (0) target = $region9
    $region8: #{tpu_custom_call.1} parent=1 // pred_region
      %s26 = ssub.s32 64, 64
      %27 = vsyncadd [#allocation6], %s26
      %s29 = sshll.u32 [#allocation5], 4
      %s30 = int_to_ptr.vmem [resolvable:$true] %s29
      %32 = dma.hbm_to_vmem [thread:$0]  %s1, 64, %s30, [#allocation6]
    $region9: #{tpu_custom_call.1} parent=1 // pred_fallthru
      _
    // Predicated region
    $region10: #{tpu_custom_call.1} parent=1 // pred_check
      _
    $region11: #{tpu_custom_call.1} parent=1 // pred_check_branch
      %34 = sbr.rel (0) target = $region13
    $region12: #{tpu_custom_call.1} parent=1 // pred_region
      _
    $region13: #{tpu_custom_call.1} parent=1 // pred_fallthru
      _
    // Predicated region
    $region14: #{tpu_custom_call.1} parent=1 // pred_check
      _
    $region15: #{tpu_custom_call.1} parent=1 // pred_check_branch
      %36 = sbr.rel (0) target = $region17
    $region16: #{tpu_custom_call.1} parent=1 // pred_region
      _
    $region17: #{tpu_custom_call.1} parent=1 // pred_fallthru
      _
    // Predicated region
    $region18: #{tpu_custom_call.1} parent=1 // pred_check
      _
    $region19: #{tpu_custom_call.1} parent=1 // pred_check_branch
      %38 = sbr.rel (0) target = $region21
    $region20: #{tpu_custom_call.1} parent=1 // pred_region
      _
    $region21: #{tpu_custom_call.1} parent=1 // pred_fallthru
      _
    // Predicated region
    $region22: #{tpu_custom_call.1} parent=1 // pred_check
      _
    $region23: #{tpu_custom_call.1} parent=1 // pred_check_branch
      %40 = sbr.rel (0) target = $region25
    $region24: #{tpu_custom_call.1} parent=1 // pred_region
      %41 = dma.done [#allocation3], 64
    $region25: #{tpu_custom_call.1} parent=1 // pred_fallthru
      _
    // Predicated region
    $region26: #{tpu_custom_call.1} parent=1 // pred_check
      _
    $region27: #{tpu_custom_call.1} parent=1 // pred_check_branch
      %43 = sbr.rel (0) target = $region29
    $region28: #{tpu_custom_call.1} parent=1 // pred_region
      %44 = dma.done [#allocation6], 64
    $region29: #{tpu_custom_call.1} parent=1 // pred_fallthru
      _
    %v45 = vld [vmem:[#allocation2] sm:$0xf]
    %v46 = vld [vmem:[#allocation5] sm:$0xf]
    %vm47 = vcmask 31744
    %v49 = vsel %vm47, %v45, 0
    %vm51 = vcmask 1043456
    %v53 = vsel %vm51, %v46, 0
    %55 = vmatprep.subr.mxu0 0.0
    %56 = vmatpush1.msra.mxu0 0.0
    %57 = vmatprep.subr.mxu0 0.0
    %58 = vmatpush1.msra.mxu0 0.0
    %59 = vmatprep.subr.mxu0 0.0
    %60 = vmatpush1.msra.mxu0 0.0
    %61 = vmatprep.subr.mxu0 0.0
    %62 = vmatpush1.msra.mxu0 0.0
    %63 = vmatprep.subr.mxu0 0.0
    %64 = vmatpush1.msra.mxu0 0.0
    %65 = vmatprep.subr.mxu0 0.0
    %66 = vmatpush1.msra.mxu0 0.0
    %67 = vmatprep.subr.mxu0 0.0
    %68 = vmatpush1.msra.mxu0 0.0
    %69 = vmatprep.subr.mxu0 0.0
    %70 = vmatpush1.msra.mxu0 0.0
    %71 = vmatprep.subr.mxu0 0.0
    %72 = vmatpush1.msra.mxu0 0.0
    %73 = vmatprep.subr.mxu0 0.0
    %74 = vmatpush1.msra.mxu0 0.0
    %75 = vmatprep.subr.mxu0 0.0
    %76 = vmatpush1.msra.mxu0 0.0
    %77 = vmatprep.subr.mxu0 0.0
    %78 = vmatpush1.msra.mxu0 0.0
    %79 = vmatprep.subr.mxu0 0.0
    %80 = vmatpush1.msra.mxu0 0.0
    %81 = vmatprep.subr.mxu0 0.0
    %82 = vmatpush1.msra.mxu0 0.0
    %83 = vmatprep.subr.mxu0 0.0
    %84 = vmatpush1.msra.mxu0 0.0
    %85 = vmatprep.subr.mxu0 0.0
    %v86 = vand.u32 %v53, 4294901760
    %87 = vmatpush1.msra.mxu0 %v86
    %88 = vmatprep.subr.mxu0 0.0
    %89 = vmatpush2.msra.mxu0 0.0
    %90 = vmatprep.subr.mxu0 0.0
    %91 = vmatpush2.msra.mxu0 0.0
    %92 = vmatprep.subr.mxu0 0.0
    %93 = vmatpush2.msra.mxu0 0.0
    %94 = vmatprep.subr.mxu0 0.0
    %95 = vmatpush2.msra.mxu0 0.0
    %96 = vmatprep.subr.mxu0 0.0
    %97 = vmatpush2.msra.mxu0 0.0
    %98 = vmatprep.subr.mxu0 0.0
    %99 = vmatpush2.msra.mxu0 0.0
    %100 = vmatprep.subr.mxu0 0.0
    %101 = vmatpush2.msra.mxu0 0.0
    %102 = vmatprep.subr.mxu0 0.0
    %103 = vmatpush2.msra.mxu0 0.0
    %104 = vmatprep.subr.mxu0 0.0
    %105 = vmatpush2.msra.mxu0 0.0
    %106 = vmatprep.subr.mxu0 0.0
    %107 = vmatpush2.msra.mxu0 0.0
    %108 = vmatprep.subr.mxu0 0.0
    %109 = vmatpush2.msra.mxu0 0.0
    %110 = vmatprep.subr.mxu0 0.0
    %111 = vmatpush2.msra.mxu0 0.0
    %112 = vmatprep.subr.mxu0 0.0
    %113 = vmatpush2.msra.mxu0 0.0
    %114 = vmatprep.subr.mxu0 0.0
    %115 = vmatpush2.msra.mxu0 0.0
    %116 = vmatprep.subr.mxu0 0.0
    %117 = vmatpush2.msra.mxu0 0.0
    %118 = vmatprep.subr.mxu0 0.0
    %119 = vmatpush2.msra.mxu0 0.0
    %120 = vmatprep.mubr.f32.mxu0 0.0
    %v121 = vand.u32 %v49, 4294901760
    %v122 = vsub.f32 %v49, %v121
    %v123 = vand.u32 %v122, 4294901760
    %v124 = vsub.f32 %v122, %v123
    %v125 = vand.u32 %v124, 4294901760
    %126 = vmatmul.mubr.f32.gmra.mxu0 %v125
    %v127 = vpop.f32.mrf.mxu0
    %v128 = vadd.f32 0.0, %v127
    %v129 = vpop.f32.mrf.mxu0
    %130 = vdwg.mxu0
    %131 = vmatprep.subr.mxu0 0.0
    %132 = vmatpush1.msra.mxu0 0.0
    %133 = vmatprep.subr.mxu0 0.0
    %134 = vmatpush1.msra.mxu0 0.0
    %135 = vmatprep.subr.mxu0 0.0
    %136 = vmatpush1.msra.mxu0 0.0
    %137 = vmatprep.subr.mxu0 0.0
    %138 = vmatpush1.msra.mxu0 0.0
    %139 = vmatprep.subr.mxu0 0.0
    %140 = vmatpush1.msra.mxu0 0.0
    %141 = vmatprep.subr.mxu0 0.0
    %142 = vmatpush1.msra.mxu0 0.0
    %143 = vmatprep.subr.mxu0 0.0
    %144 = vmatpush1.msra.mxu0 0.0
    %145 = vmatprep.subr.mxu0 0.0
    %146 = vmatpush1.msra.mxu0 0.0
    %147 = vmatprep.subr.mxu0 0.0
    %148 = vmatpush1.msra.mxu0 0.0
    %149 = vmatprep.subr.mxu0 0.0
    %150 = vmatpush1.msra.mxu0 0.0
    %151 = vmatprep.subr.mxu0 0.0
    %152 = vmatpush1.msra.mxu0 0.0
    %153 = vmatprep.subr.mxu0 0.0
    %154 = vmatpush1.msra.mxu0 0.0
    %155 = vmatprep.subr.mxu0 0.0
    %156 = vmatpush1.msra.mxu0 0.0
    %157 = vmatprep.subr.mxu0 0.0
    %158 = vmatpush1.msra.mxu0 0.0
    %159 = vmatprep.subr.mxu0 0.0
    %160 = vmatpush1.msra.mxu0 0.0
    %161 = vmatprep.subr.mxu0 0.0
    %v162 = vand.u32 %v53, 4294901760
    %v163 = vsub.f32 %v53, %v162
    %v164 = vand.u32 %v163, 4294901760
    %v165 = vsub.f32 %v163, %v164
    %v166 = vand.u32 %v165, 4294901760
    %167 = vmatpush1.msra.mxu0 %v166
    %168 = vmatprep.subr.mxu0 0.0
    %169 = vmatpush2.msra.mxu0 0.0
    %170 = vmatprep.subr.mxu0 0.0
    %171 = vmatpush2.msra.mxu0 0.0
    %172 = vmatprep.subr.mxu0 0.0
    %173 = vmatpush2.msra.mxu0 0.0
    %174 = vmatprep.subr.mxu0 0.0
    %175 = vmatpush2.msra.mxu0 0.0
    %176 = vmatprep.subr.mxu0 0.0
    %177 = vmatpush2.msra.mxu0 0.0
    %178 = vmatprep.subr.mxu0 0.0
    %179 = vmatpush2.msra.mxu0 0.0
    %180 = vmatprep.subr.mxu0 0.0
    %181 = vmatpush2.msra.mxu0 0.0
    %182 = vmatprep.subr.mxu0 0.0
    %183 = vmatpush2.msra.mxu0 0.0
    %184 = vmatprep.subr.mxu0 0.0
    %185 = vmatpush2.msra.mxu0 0.0
    %186 = vmatprep.subr.mxu0 0.0
    %187 = vmatpush2.msra.mxu0 0.0
    %188 = vmatprep.subr.mxu0 0.0
    %189 = vmatpush2.msra.mxu0 0.0
    %190 = vmatprep.subr.mxu0 0.0
    %191 = vmatpush2.msra.mxu0 0.0
    %192 = vmatprep.subr.mxu0 0.0
    %193 = vmatpush2.msra.mxu0 0.0
    %194 = vmatprep.subr.mxu0 0.0
    %195 = vmatpush2.msra.mxu0 0.0
    %196 = vmatprep.subr.mxu0 0.0
    %197 = vmatpush2.msra.mxu0 0.0
    %198 = vmatprep.subr.mxu0 0.0
    %199 = vmatpush2.msra.mxu0 0.0
    %200 = vmatprep.mubr.f32.mxu0 0.0
    %v201 = vand.u32 %v49, 4294901760
    %202 = vmatmul.mubr.f32.gmra.mxu0 %v201
    %v203 = vpop.f32.mrf.mxu0
    %v204 = vadd.f32 %v128, %v203
    %v205 = vpop.f32.mrf.mxu0
    %206 = vdwg.mxu0
    %207 = vmatprep.subr.mxu0 0.0
    %208 = vmatpush1.msra.mxu0 0.0
    %209 = vmatprep.subr.mxu0 0.0
    %210 = vmatpush1.msra.mxu0 0.0
    %211 = vmatprep.subr.mxu0 0.0
    %212 = vmatpush1.msra.mxu0 0.0
    %213 = vmatprep.subr.mxu0 0.0
    %214 = vmatpush1.msra.mxu0 0.0
    %215 = vmatprep.subr.mxu0 0.0
    %216 = vmatpush1.msra.mxu0 0.0
    %217 = vmatprep.subr.mxu0 0.0
    %218 = vmatpush1.msra.mxu0 0.0
    %219 = vmatprep.subr.mxu0 0.0
    %220 = vmatpush1.msra.mxu0 0.0
    %221 = vmatprep.subr.mxu0 0.0
    %222 = vmatpush1.msra.mxu0 0.0
    %223 = vmatprep.subr.mxu0 0.0
    %224 = vmatpush1.msra.mxu0 0.0
    %225 = vmatprep.subr.mxu0 0.0
    %226 = vmatpush1.msra.mxu0 0.0
    %227 = vmatprep.subr.mxu0 0.0
    %228 = vmatpush1.msra.mxu0 0.0
    %229 = vmatprep.subr.mxu0 0.0
    %230 = vmatpush1.msra.mxu0 0.0
    %231 = vmatprep.subr.mxu0 0.0
    %232 = vmatpush1.msra.mxu0 0.0
    %233 = vmatprep.subr.mxu0 0.0
    %234 = vmatpush1.msra.mxu0 0.0
    %235 = vmatprep.subr.mxu0 0.0
    %236 = vmatpush1.msra.mxu0 0.0
    %237 = vmatprep.subr.mxu0 0.0
    %v238 = vand.u32 %v53, 4294901760
    %v239 = vsub.f32 %v53, %v238
    %240 = vmatpush1.msra.mxu0 %v239
    %241 = vmatprep.subr.mxu0 0.0
    %242 = vmatpush2.msra.mxu0 0.0
    %243 = vmatprep.subr.mxu0 0.0
    %244 = vmatpush2.msra.mxu0 0.0
    %245 = vmatprep.subr.mxu0 0.0
    %246 = vmatpush2.msra.mxu0 0.0
    %247 = vmatprep.subr.mxu0 0.0
    %248 = vmatpush2.msra.mxu0 0.0
    %249 = vmatprep.subr.mxu0 0.0
    %250 = vmatpush2.msra.mxu0 0.0
    %251 = vmatprep.subr.mxu0 0.0
    %252 = vmatpush2.msra.mxu0 0.0
    %253 = vmatprep.subr.mxu0 0.0
    %254 = vmatpush2.msra.mxu0 0.0
    %255 = vmatprep.subr.mxu0 0.0
    %256 = vmatpush2.msra.mxu0 0.0
    %257 = vmatprep.subr.mxu0 0.0
    %258 = vmatpush2.msra.mxu0 0.0
    %259 = vmatprep.subr.mxu0 0.0
    %260 = vmatpush2.msra.mxu0 0.0
    %261 = vmatprep.subr.mxu0 0.0
    %262 = vmatpush2.msra.mxu0 0.0
    %263 = vmatprep.subr.mxu0 0.0
    %264 = vmatpush2.msra.mxu0 0.0
    %265 = vmatprep.subr.mxu0 0.0
    %266 = vmatpush2.msra.mxu0 0.0
    %267 = vmatprep.subr.mxu0 0.0
    %268 = vmatpush2.msra.mxu0 0.0
    %269 = vmatprep.subr.mxu0 0.0
    %270 = vmatpush2.msra.mxu0 0.0
    %271 = vmatprep.subr.mxu0 0.0
    %272 = vmatpush2.msra.mxu0 0.0
    %273 = vmatprep.mubr.f32.mxu0 0.0
    %v274 = vand.u32 %v49, 4294901760
    %v275 = vsub.f32 %v49, %v274
    %276 = vmatmul.mubr.f32.gmra.mxu0 %v275
    %v277 = vpop.f32.mrf.mxu0
    %v278 = vadd.f32 %v204, %v277
    %v279 = vpop.f32.mrf.mxu0
    %280 = vdwg.mxu0
    %281 = vmatprep.subr.mxu0 0.0
    %282 = vmatpush1.msra.mxu0 0.0
    %283 = vmatprep.subr.mxu0 0.0
    %284 = vmatpush1.msra.mxu0 0.0
    %285 = vmatprep.subr.mxu0 0.0
    %286 = vmatpush1.msra.mxu0 0.0
    %287 = vmatprep.subr.mxu0 0.0
    %288 = vmatpush1.msra.mxu0 0.0
    %289 = vmatprep.subr.mxu0 0.0
    %290 = vmatpush1.msra.mxu0 0.0
    %291 = vmatprep.subr.mxu0 0.0
    %292 = vmatpush1.msra.mxu0 0.0
    %293 = vmatprep.subr.mxu0 0.0
    %294 = vmatpush1.msra.mxu0 0.0
    %295 = vmatprep.subr.mxu0 0.0
    %296 = vmatpush1.msra.mxu0 0.0
    %297 = vmatprep.subr.mxu0 0.0
    %298 = vmatpush1.msra.mxu0 0.0
    %299 = vmatprep.subr.mxu0 0.0
    %300 = vmatpush1.msra.mxu0 0.0
    %301 = vmatprep.subr.mxu0 0.0
    %302 = vmatpush1.msra.mxu0 0.0
    %303 = vmatprep.subr.mxu0 0.0
    %304 = vmatpush1.msra.mxu0 0.0
    %305 = vmatprep.subr.mxu0 0.0
    %306 = vmatpush1.msra.mxu0 0.0
    %307 = vmatprep.subr.mxu0 0.0
    %308 = vmatpush1.msra.mxu0 0.0
    %309 = vmatprep.subr.mxu0 0.0
    %310 = vmatpush1.msra.mxu0 0.0
    %311 = vmatprep.subr.mxu0 0.0
    %v312 = vand.u32 %v53, 4294901760
    %313 = vmatpush1.msra.mxu0 %v312
    %314 = vmatprep.subr.mxu0 0.0
    %315 = vmatpush2.msra.mxu0 0.0
    %316 = vmatprep.subr.mxu0 0.0
    %317 = vmatpush2.msra.mxu0 0.0
    %318 = vmatprep.subr.mxu0 0.0
    %319 = vmatpush2.msra.mxu0 0.0
    %320 = vmatprep.subr.mxu0 0.0
    %321 = vmatpush2.msra.mxu0 0.0
    %322 = vmatprep.subr.mxu0 0.0
    %323 = vmatpush2.msra.mxu0 0.0
    %324 = vmatprep.subr.mxu0 0.0
    %325 = vmatpush2.msra.mxu0 0.0
    %326 = vmatprep.subr.mxu0 0.0
    %327 = vmatpush2.msra.mxu0 0.0
    %328 = vmatprep.subr.mxu0 0.0
    %329 = vmatpush2.msra.mxu0 0.0
    %330 = vmatprep.subr.mxu0 0.0
    %331 = vmatpush2.msra.mxu0 0.0
    %332 = vmatprep.subr.mxu0 0.0
    %333 = vmatpush2.msra.mxu0 0.0
    %334 = vmatprep.subr.mxu0 0.0
    %335 = vmatpush2.msra.mxu0 0.0
    %336 = vmatprep.subr.mxu0 0.0
    %337 = vmatpush2.msra.mxu0 0.0
    %338 = vmatprep.subr.mxu0 0.0
    %339 = vmatpush2.msra.mxu0 0.0
    %340 = vmatprep.subr.mxu0 0.0
    %341 = vmatpush2.msra.mxu0 0.0
    %342 = vmatprep.subr.mxu0 0.0
    %343 = vmatpush2.msra.mxu0 0.0
    %344 = vmatprep.subr.mxu0 0.0
    %345 = vmatpush2.msra.mxu0 0.0
    %346 = vmatprep.mubr.f32.mxu0 0.0
    %v347 = vand.u32 %v49, 4294901760
    %v348 = vsub.f32 %v49, %v347
    %v349 = vand.u32 %v348, 4294901760
    %350 = vmatmul.mubr.f32.gmra.mxu0 %v349
    %v351 = vpop.f32.mrf.mxu0
    %v352 = vadd.f32 %v278, %v351
    %v353 = vpop.f32.mrf.mxu0
    %354 = vdwg.mxu0
    %355 = vmatprep.subr.mxu0 0.0
    %356 = vmatpush1.msra.mxu0 0.0
    %357 = vmatprep.subr.mxu0 0.0
    %358 = vmatpush1.msra.mxu0 0.0
    %359 = vmatprep.subr.mxu0 0.0
    %360 = vmatpush1.msra.mxu0 0.0
    %361 = vmatprep.subr.mxu0 0.0
    %362 = vmatpush1.msra.mxu0 0.0
    %363 = vmatprep.subr.mxu0 0.0
    %364 = vmatpush1.msra.mxu0 0.0
    %365 = vmatprep.subr.mxu0 0.0
    %366 = vmatpush1.msra.mxu0 0.0
    %367 = vmatprep.subr.mxu0 0.0
    %368 = vmatpush1.msra.mxu0 0.0
    %369 = vmatprep.subr.mxu0 0.0
    %370 = vmatpush1.msra.mxu0 0.0
    %371 = vmatprep.subr.mxu0 0.0
    %372 = vmatpush1.msra.mxu0 0.0
    %373 = vmatprep.subr.mxu0 0.0
    %374 = vmatpush1.msra.mxu0 0.0
    %375 = vmatprep.subr.mxu0 0.0
    %376 = vmatpush1.msra.mxu0 0.0
    %377 = vmatprep.subr.mxu0 0.0
    %378 = vmatpush1.msra.mxu0 0.0
    %379 = vmatprep.subr.mxu0 0.0
    %380 = vmatpush1.msra.mxu0 0.0
    %381 = vmatprep.subr.mxu0 0.0
    %382 = vmatpush1.msra.mxu0 0.0
    %383 = vmatprep.subr.mxu0 0.0
    %384 = vmatpush1.msra.mxu0 0.0
    %385 = vmatprep.subr.mxu0 0.0
    %v386 = vand.u32 %v53, 4294901760
    %v387 = vsub.f32 %v53, %v386
    %v388 = vand.u32 %v387, 4294901760
    %389 = vmatpush1.msra.mxu0 %v388
    %390 = vmatprep.subr.mxu0 0.0
    %391 = vmatpush2.msra.mxu0 0.0
    %392 = vmatprep.subr.mxu0 0.0
    %393 = vmatpush2.msra.mxu0 0.0
    %394 = vmatprep.subr.mxu0 0.0
    %395 = vmatpush2.msra.mxu0 0.0
    %396 = vmatprep.subr.mxu0 0.0
    %397 = vmatpush2.msra.mxu0 0.0
    %398 = vmatprep.subr.mxu0 0.0
    %399 = vmatpush2.msra.mxu0 0.0
    %400 = vmatprep.subr.mxu0 0.0
    %401 = vmatpush2.msra.mxu0 0.0
    %402 = vmatprep.subr.mxu0 0.0
    %403 = vmatpush2.msra.mxu0 0.0
    %404 = vmatprep.subr.mxu0 0.0
    %405 = vmatpush2.msra.mxu0 0.0
    %406 = vmatprep.subr.mxu0 0.0
    %407 = vmatpush2.msra.mxu0 0.0
    %408 = vmatprep.subr.mxu0 0.0
    %409 = vmatpush2.msra.mxu0 0.0
    %410 = vmatprep.subr.mxu0 0.0
    %411 = vmatpush2.msra.mxu0 0.0
    %412 = vmatprep.subr.mxu0 0.0
    %413 = vmatpush2.msra.mxu0 0.0
    %414 = vmatprep.subr.mxu0 0.0
    %415 = vmatpush2.msra.mxu0 0.0
    %416 = vmatprep.subr.mxu0 0.0
    %417 = vmatpush2.msra.mxu0 0.0
    %418 = vmatprep.subr.mxu0 0.0
    %419 = vmatpush2.msra.mxu0 0.0
    %420 = vmatprep.subr.mxu0 0.0
    %421 = vmatpush2.msra.mxu0 0.0
    %422 = vmatprep.mubr.f32.mxu0 0.0
    %v423 = vand.u32 %v49, 4294901760
    %424 = vmatmul.mubr.f32.gmra.mxu0 %v423
    %v425 = vpop.f32.mrf.mxu0
    %v426 = vadd.f32 %v352, %v425
    %v427 = vpop.f32.mrf.mxu0
    %428 = vdwg.mxu0
    %429 = vmatprep.subr.mxu0 0.0
    %430 = vmatpush1.msra.mxu0 0.0
    %431 = vmatprep.subr.mxu0 0.0
    %432 = vmatpush1.msra.mxu0 0.0
    %433 = vmatprep.subr.mxu0 0.0
    %434 = vmatpush1.msra.mxu0 0.0
    %435 = vmatprep.subr.mxu0 0.0
    %436 = vmatpush1.msra.mxu0 0.0
    %437 = vmatprep.subr.mxu0 0.0
    %438 = vmatpush1.msra.mxu0 0.0
    %439 = vmatprep.subr.mxu0 0.0
    %440 = vmatpush1.msra.mxu0 0.0
    %441 = vmatprep.subr.mxu0 0.0
    %442 = vmatpush1.msra.mxu0 0.0
    %443 = vmatprep.subr.mxu0 0.0
    %444 = vmatpush1.msra.mxu0 0.0
    %445 = vmatprep.subr.mxu0 0.0
    %446 = vmatpush1.msra.mxu0 0.0
    %447 = vmatprep.subr.mxu0 0.0
    %448 = vmatpush1.msra.mxu0 0.0
    %449 = vmatprep.subr.mxu0 0.0
    %450 = vmatpush1.msra.mxu0 0.0
    %451 = vmatprep.subr.mxu0 0.0
    %452 = vmatpush1.msra.mxu0 0.0
    %453 = vmatprep.subr.mxu0 0.0
    %454 = vmatpush1.msra.mxu0 0.0
    %455 = vmatprep.subr.mxu0 0.0
    %456 = vmatpush1.msra.mxu0 0.0
    %457 = vmatprep.subr.mxu0 0.0
    %458 = vmatpush1.msra.mxu0 0.0
    %459 = vmatprep.subr.mxu0 0.0
    %v460 = vand.u32 %v53, 4294901760
    %461 = vmatpush1.msra.mxu0 %v460
    %462 = vmatprep.subr.mxu0 0.0
    %463 = vmatpush2.msra.mxu0 0.0
    %464 = vmatprep.subr.mxu0 0.0
    %465 = vmatpush2.msra.mxu0 0.0
    %466 = vmatprep.subr.mxu0 0.0
    %467 = vmatpush2.msra.mxu0 0.0
    %468 = vmatprep.subr.mxu0 0.0
    %469 = vmatpush2.msra.mxu0 0.0
    %470 = vmatprep.subr.mxu0 0.0
    %471 = vmatpush2.msra.mxu0 0.0
    %472 = vmatprep.subr.mxu0 0.0
    %473 = vmatpush2.msra.mxu0 0.0
    %474 = vmatprep.subr.mxu0 0.0
    %475 = vmatpush2.msra.mxu0 0.0
    %476 = vmatprep.subr.mxu0 0.0
    %477 = vmatpush2.msra.mxu0 0.0
    %478 = vmatprep.subr.mxu0 0.0
    %479 = vmatpush2.msra.mxu0 0.0
    %480 = vmatprep.subr.mxu0 0.0
    %481 = vmatpush2.msra.mxu0 0.0
    %482 = vmatprep.subr.mxu0 0.0
    %483 = vmatpush2.msra.mxu0 0.0
    %484 = vmatprep.subr.mxu0 0.0
    %485 = vmatpush2.msra.mxu0 0.0
    %486 = vmatprep.subr.mxu0 0.0
    %487 = vmatpush2.msra.mxu0 0.0
    %488 = vmatprep.subr.mxu0 0.0
    %489 = vmatpush2.msra.mxu0 0.0
    %490 = vmatprep.subr.mxu0 0.0
    %491 = vmatpush2.msra.mxu0 0.0
    %492 = vmatprep.subr.mxu0 0.0
    %493 = vmatpush2.msra.mxu0 0.0
    %494 = vmatprep.mubr.f32.mxu0 0.0
    %v495 = vand.u32 %v49, 4294901760
    %496 = vmatmul.mubr.f32.gmra.mxu0 %v495
    %v497 = vpop.f32.mrf.mxu0
    %v498 = vadd.f32 %v426, %v497
    %v499 = vpop.f32.mrf.mxu0
    %500 = vdwg.mxu0
    %v501 = vld [vmem:[%s2] sm:$0x1]
    %v503 = vlaneseq
    %v504 = vshrl.u32 %v503, 7
    %v505 = vsub.s32 0, %v504
    %v506 = vrot.slane %v501, %v505
    %v508 = vmul.f32 %v498, %v506
    %v509 = vmul.f32 %v508, 0.63661975
    %v510 = vadd.f32 %v509, 0.5
    %v511 = vfloor.f32 %v510
    %v512 = vmul.f32 %v511, 1.5703125
    %v513 = vsub.f32 %v508, %v512
    %v514 = vmul.f32 %v511, 0.0004837513
    %v515 = vsub.f32 %v513, %v514
    %v516 = vmul.f32 %v511, 7.54979e-08
    %v517 = vsub.f32 %v515, %v516
    %v518 = vld [vmem:[%s3] sm:$0x1]
    %v520 = vlaneseq
    %v521 = vshrl.u32 %v520, 7
    %v522 = vsub.s32 0, %v521
    %v523 = vrot.slane %v518, %v522
    %v525 = vadd.f32 %v511, %v523
    %v526 = vcvt.f32.s32.to.zero.pseudo %v525
    %v527 = vmul.f32 %v517, %v517
    %v528 = vmul.f32 %v517, %v527
    %v529 = vmul.f32 %v527, -0.00019515296
    %v530 = vadd.f32 %v529, 0.008332161
    %v531 = vmul.f32 %v527, %v530
    %v532 = vadd.f32 %v531, -0.16666655
    %v533 = vmul.f32 %v528, %v532
    %v534 = vadd.f32 %v517, %v533
    %v535 = vmul.f32 %v527, 0.5
    %v536 = vsub.f32 1.0, %v535
    %v537 = vmul.f32 %v527, %v527
    %v538 = vmul.f32 %v527, 2.4433157e-05
    %v539 = vadd.f32 %v538, -0.0013887316
    %v540 = vmul.f32 %v527, %v539
    %v541 = vadd.f32 %v540, 0.041666646
    %v542 = vmul.f32 %v537, %v541
    %v543 = vadd.f32 %v536, %v542
    %v544 = vand.u32 %v526, 1
    %vm545 = vcmp.eq.s32.totalorder %v544, 1
    %v546 = vsel %vm545, %v543, %v534
    %v547 = vand.u32 %v526, 2
    %vm548 = vcmp.eq.s32.totalorder %v547, 2
    %v549 = vsub.f32 0.0, %v546
    %v550 = vsel %vm548, %v549, %v546
    %v551 = vld [vmem:[%s4] sm:$0x1]
    %v553 = vlaneseq
    %v554 = vshrl.u32 %v553, 7
    %v555 = vsub.s32 0, %v554
    %v556 = vrot.slane %v551, %v555
    %v558 = vmul.f32 %v550, %v556
    %559 = vst [vmem:[#allocation7] sm:$0xf] %v558
    // Predicated region
    $region30: #{tpu_custom_call.1} parent=1 // pred_check
      _
    $region31: #{tpu_custom_call.1} parent=1 // pred_check_branch
      %561 = sbr.rel (0) target = $region33
    $region32: #{tpu_custom_call.1} parent=1 // pred_region
      %s563 = ssub.s32 64, 64
      %564 = vsyncadd [#allocation4], %s563
      %s566 = sshll.u32 [#allocation7], 4
      %s567 = int_to_ptr.vmem [resolvable:$true] %s566
      %569 = dma.vmem_to_hbm [thread:$0]  %s567, 64, %s5, [#allocation4]
    $region33: #{tpu_custom_call.1} parent=1 // pred_fallthru
      _
    // Predicated region
    $region34: #{tpu_custom_call.1} parent=1 // pred_check
      _
    $region35: #{tpu_custom_call.1} parent=1 // pred_check_branch
      %571 = sbr.rel (0) target = $region37
    $region36: #{tpu_custom_call.1} parent=1 // pred_region
      %572 = dma.done [#allocation4], 64
    $region37: #{tpu_custom_call.1} parent=1 // pred_fallthru
      _
    %573 = vsyncpa [#allocation3], 1
    %574 = vsyncpa [#allocation6], 1
    %575 = vsyncpa [#allocation4], 1

</llo_original>
